<compile_context>
chip_gen: v5e
topology: v5e:2x2
jax: 0.10.0
libtpu: 0.0.40
codegen_flags: <defaults>
</compile_context>

<pallas_src>
import jax
import jax.numpy as jnp
from jax.experimental import pallas as pl
from jax.experimental.pallas import tpu as pltpu

# ---------------- synthetic config (small, Gemma3-like) ----------------
BATCH = 2
SEQ = 8                      # q_seq_len == kv_seq_len (prefill)
HIDDEN = 32
NUM_HEADS = 4
NUM_KV_HEADS = 2
HEAD_DIM = 16                # q head dim
K_HEAD_DIM = 16
V_HEAD_DIM = 16
Q_RANK = 2                   # equal per-head rank -> q_per_head_ranks = [2]*NUM_HEADS
K_RANK = 2
V_RANK = 2
Q_MAX_HEAD_RANK = Q_RANK
Q_PER_HEAD_RANKS = [Q_RANK] * NUM_HEADS
Q_HEAD_OFFSETS = [h * Q_RANK for h in range(NUM_HEADS + 1)]
TOTAL_Q_RANK = Q_HEAD_OFFSETS[-1]
TOTAL_A_RANK = TOTAL_Q_RANK + NUM_KV_HEADS * K_RANK + NUM_KV_HEADS * V_RANK
HEADS_PER_KV = NUM_HEADS // NUM_KV_HEADS
RMS_EPS = 1e-6
USE_QK_NORM = True
ATTN_LOGIT_SOFTCAP = None    # config.attn_logit_softcapping is None
SCALING = HEAD_DIM ** -0.5   # query_pre_attn_scalar is None
MASK_VALUE = -2.3819763e38   # same finite big-negative the Gemma stack uses
APPLY_NAN_GUARD = False      # reference only rewrites the output if NaNs are detected;
                             # with a finite mask + max-subtracted softmax none can occur


# ---------------- fused Pallas kernel (per batch element) ----------------
def _svd_tpa_fused_kernel(x_ref, wa_ref, bq_ref, bk_ref, bv_ref,
                          qs_ref, ks_ref, wo_ref, o_ref, attn_ref):
    """Fully fused TPA forward for one batch element.

    x_ref   : (S, H)                          hidden states
    wa_ref  : (H, TOTAL_A_RANK)               [W_A_q | W_A_k | W_A_v] fused A projection
    bq_ref  : (nh*max_rank, Dq)               B_const_q rows (1/rank baked in)
    bk_ref  : (nkv*k_rank, Dk)                B_const_k rows (1/rank baked in)
    bv_ref  : (nkv*v_rank, Dv)                B_const_v rows (1/rank baked in)
    qs_ref  : (1, Dq)                         (1 + q_norm_w) * scaling
    ks_ref  : (1, Dk)                         (1 + k_norm_w)
    wo_ref  : (nh*Dv, H)                      o_proj weight, stored (in, out)
    o_ref   : (S, H)                          output (only HBM store, fused o_proj)
    attn_ref: (S, nh*Dv) VMEM scratch         per-head attention outputs (slice-assigned)
    """
    dtype = x_ref.dtype
    S = SEQ
    x = x_ref[...]

    # --- one fused A-factor projection (nn.Linear, no bias), f32 accumulation ---
    a_all = jnp.dot(x, wa_ref[...], preferred_element_type=jnp.float32)   # (S, total)
    a_q = a_all[:, :TOTAL_Q_RANK]
    a_k = a_all[:, TOTAL_Q_RANK:TOTAL_Q_RANK + NUM_KV_HEADS * K_RANK]
    a_v = a_all[:, TOTAL_Q_RANK + NUM_KV_HEADS * K_RANK:]

    bq = bq_ref[...]
    bk = bk_ref[...]
    bv = bv_ref[...]
    qs = qs_ref[...]            # (1, Dq)  includes folded softmax scaling
    ks = ks_ref[...]            # (1, Dk)

    # --- low-rank Q reconstruction: per-rank broadcast FMAs on the VPU (no zero-filled
    #     block-diagonal MXU matmul).  Heads stacked along M (head-major sublanes). ---
    q_heads = []
    for h in range(NUM_HEADS):
        off = Q_HEAD_OFFSETS[h]
        row0 = h * Q_MAX_HEAD_RANK
        qh = a_q[:, off:off + 1] * bq[row0:row0 + 1, :]
        for r in range(1, Q_PER_HEAD_RANKS[h]):
            qh = qh + a_q[:, off + r:off + r + 1] * bq[row0 + r:row0 + r + 1, :]
        q_heads.append(qh)
    q_st = jnp.concatenate(q_heads, axis=0)            # (nh*S, Dq) f32

    # QK RMSNorm applied once to the whole stacked slab (single qs broadcast per step);
    # softmax scaling is already folded into qs.
    if USE_QK_NORM:
        q_st = q_st * jax.lax.rsqrt(
            jnp.mean(q_st * q_st, axis=-1, keepdims=True) + RMS_EPS) * qs
    else:
        q_st = q_st * SCALING
    q_st = q_st.astype(dtype)

    # --- causal additive bias generated in-kernel (hoisted out of the group loop) ---
    row = jax.lax.broadcasted_iota(jnp.int32, (S, S), 0)
    col = jax.lax.broadcasted_iota(jnp.int32, (S, S), 1)
    bias = jnp.where(col <= row, 0.0, MASK_VALUE).astype(jnp.float32)     # (S, S)
    bias = jnp.concatenate([bias] * HEADS_PER_KV, axis=0)                 # (hpk*S, S)

    # --- attention per KV group: heads of the group batched along M, K/V loaded once ---
    for g in range(NUM_KV_HEADS):
        r0 = g * K_RANK
        kg = a_k[:, r0:r0 + 1] * bk[r0:r0 + 1, :]
        for r in range(1, K_RANK):
            kg = kg + a_k[:, r0 + r:r0 + r + 1] * bk[r0 + r:r0 + r + 1, :]
        r0v = g * V_RANK
        vg = a_v[:, r0v:r0v + 1] * bv[r0v:r0v + 1, :]
        for r in range(1, V_RANK):
            vg = vg + a_v[:, r0v + r:r0v + r + 1] * bv[r0v + r:r0v + r + 1, :]
        if USE_QK_NORM:
            kg = kg * jax.lax.rsqrt(
                jnp.mean(kg * kg, axis=-1, keepdims=True) + RMS_EPS) * ks
        kg = kg.astype(dtype)
        vg = vg.astype(dtype)

        q_g = q_st[g * HEADS_PER_KV * S:(g + 1) * HEADS_PER_KV * S, :]    # (hpk*S, Dq)

        # (hpk*S, Dq) @ (Dq, S) -> (hpk*S, S); scaling already folded into q.
        scores = jax.lax.dot_general(q_g, kg, (((1,), (1,)), ((), ())),
                                     preferred_element_type=jnp.float32)
        scores = scores + bias
        if ATTN_LOGIT_SOFTCAP is not None:
            scores = jnp.tanh(scores / ATTN_LOGIT_SOFTCAP) * ATTN_LOGIT_SOFTCAP

        # softmax in f32 (matches F.softmax(scores.float(), -1)); divide -> EUP reciprocal
        # (approx) + two Newton steps on the (rows, 1) vector to restore f32 precision.
        m = jnp.max(scores, axis=-1, keepdims=True)
        e = jnp.exp(scores - m)
        ssum = jnp.sum(e, axis=-1, keepdims=True)
        inv = pl.reciprocal(ssum, approx=True)
        inv = inv * (2.0 - ssum * inv)
        inv = inv * (2.0 - ssum * inv)
        p = (e * inv).astype(dtype)

        out_g = jnp.dot(p, vg, preferred_element_type=jnp.float32).astype(dtype)  # (hpk*S, Dv)

        # scatter per-head chunks into the (S, nh*Dv) VMEM scratch (no 16-lane concat)
        for hh in range(HEADS_PER_KV):
            h = g * HEADS_PER_KV + hh
            attn_ref[:, h * V_HEAD_DIM:(h + 1) * V_HEAD_DIM] = out_g[hh * S:(hh + 1) * S, :]

    # --- fused output projection; final (and only) HBM store ---
    # NOTE: HIDDEN=32 < 128 lanes at toy size -> masked partial stores; real models have
    # hidden >= 128 so the store is lane-dense there (perf conclusions only at real HIDDEN).
    attn = attn_ref[...]
    out = jnp.dot(attn, wo_ref[...], preferred_element_type=jnp.float32)
    if APPLY_NAN_GUARD:
        out = jnp.where(jnp.isnan(out), jnp.zeros_like(out), out)
    o_ref[...] = out.astype(o_ref.dtype)


# ---------------- forward wrapper ----------------
def svd_tpa_attention_forward(hidden_states, full_freqs_cis, params):
    B, S, H = hidden_states.shape
    assert S == SEQ and H == HIDDEN
    dtype = hidden_states.dtype

    # RoPE freqs are gathered but never applied in the reference forward.
    del full_freqs_cis

    # --- one-time parameter prep (in production: done at weight-load time) ---
    # Fused A projection weight: [W_A_q | W_A_k | W_A_v]  -> one MXU matmul in-kernel.
    w_a_all = jnp.concatenate([params["w_a_q"], params["w_a_k"], params["w_a_v"]], axis=1)
    # Flattened B factors with per-head 1/rank baked in.
    q_ranks = jnp.asarray(Q_PER_HEAD_RANKS, jnp.float32).reshape(NUM_HEADS, 1, 1)
    bq_flat = (params["b_q"] / q_ranks).reshape(NUM_HEADS * Q_MAX_HEAD_RANK, HEAD_DIM)
    bk_flat = (params["b_k"] / K_RANK).reshape(NUM_KV_HEADS * K_RANK, K_HEAD_DIM)
    bv_flat = (params["b_v"] / V_RANK).reshape(NUM_KV_HEADS * V_RANK, V_HEAD_DIM)
    # Effective norm scales: RMSNorm "(1 + w)" unit offset, with softmax scaling folded
    # into the query scale (applied post-norm, exactly equivalent to scaling the scores).
    qs_eff = ((1.0 + params["q_norm_w"]) * SCALING).reshape(1, HEAD_DIM).astype(jnp.float32)
    ks_eff = (1.0 + params["k_norm_w"]).reshape(1, K_HEAD_DIM).astype(jnp.float32)

    # --- explicit VMEM budget: double-buffered grid blocks + resident weights + scratch,
    #     with 4x headroom for compiler temporaries (floor 4 MiB).  Re-derive once S grows
    #     and KV flash-tiling lands (v7x: 64 MiB physical vs 128 MiB on v5e/v6e). ---
    f32b = 4
    block_bytes = 2 * (S * H + S * HIDDEN) * f32b
    weight_bytes = 2 * f32b * int(w_a_all.size + bq_flat.size + bk_flat.size
                                  + bv_flat.size + qs_eff.size + ks_eff.size
                                  + params["w_o"].size)
    scratch_bytes = S * NUM_HEADS * V_HEAD_DIM * f32b
    vmem_limit = int(max(4 * (block_bytes + weight_bytes + scratch_bytes), 4 << 20))

    out = pl.pallas_call(
        _svd_tpa_fused_kernel,
        out_shape=jax.ShapeDtypeStruct((B, S, HIDDEN), dtype),
        grid=(B,),
        in_specs=[
            pl.BlockSpec((None, S, H), lambda b: (b, 0, 0)),                          # hidden
            pl.BlockSpec((H, TOTAL_A_RANK), lambda b: (0, 0)),                        # fused W_A
            pl.BlockSpec((NUM_HEADS * Q_MAX_HEAD_RANK, HEAD_DIM), lambda b: (0, 0)),  # B_q
            pl.BlockSpec((NUM_KV_HEADS * K_RANK, K_HEAD_DIM), lambda b: (0, 0)),      # B_k
            pl.BlockSpec((NUM_KV_HEADS * V_RANK, V_HEAD_DIM), lambda b: (0, 0)),      # B_v
            pl.BlockSpec((1, HEAD_DIM), lambda b: (0, 0)),                            # q scale
            pl.BlockSpec((1, K_HEAD_DIM), lambda b: (0, 0)),                          # k scale
            pl.BlockSpec((NUM_HEADS * V_HEAD_DIM, HIDDEN), lambda b: (0, 0)),         # W_o
        ],
        out_specs=pl.BlockSpec((None, S, HIDDEN), lambda b: (b, 0, 0)),
        scratch_shapes=[pltpu.VMEM((S, NUM_HEADS * V_HEAD_DIM), dtype)],
        compiler_params=pltpu.CompilerParams(
            dimension_semantics=("parallel",),
            vmem_limit_bytes=vmem_limit),
    )(hidden_states, w_a_all, bq_flat, bk_flat, bv_flat, qs_eff, ks_eff, params["w_o"])
    return out


# ---------------- pure-JAX reference (for correctness check) ----------------
def reference_forward(hidden_states, mask, params):
    B, S, H = hidden_states.shape
    dtype = hidden_states.dtype
    x = hidden_states
    a_q = jnp.einsum('bsh,hr->bsr', x, params["w_a_q"]).reshape(B, S, NUM_HEADS, Q_RANK)
    a_k = jnp.einsum('bsh,hr->bsr', x, params["w_a_k"]).reshape(B, S, NUM_KV_HEADS, K_RANK)
    a_v = jnp.einsum('bsh,hr->bsr', x, params["w_a_v"]).reshape(B, S, NUM_KV_HEADS, V_RANK)

    q = jnp.einsum('bsnr,nrd->bsnd', a_q, params["b_q"]) / Q_RANK
    k_g = jnp.einsum('bsgr,grd->bsgd', a_k, params["b_k"]) / K_RANK
    v_g = jnp.einsum('bsgr,grd->bsgd', a_v, params["b_v"]) / V_RANK
    k = jnp.repeat(k_g, HEADS_PER_KV, axis=2)
    v = jnp.repeat(v_g, HEADS_PER_KV, axis=2)

    if USE_QK_NORM:
        q = q * jax.lax.rsqrt(jnp.mean(q * q, -1, keepdims=True) + RMS_EPS) * (1.0 + params["q_norm_w"])
        k = k * jax.lax.rsqrt(jnp.mean(k * k, -1, keepdims=True) + RMS_EPS) * (1.0 + params["k_norm_w"])

    qT = jnp.transpose(q, (0, 2, 1, 3))
    kT = jnp.transpose(k, (0, 2, 1, 3))
    vT = jnp.transpose(v, (0, 2, 1, 3))
    scores = jnp.einsum('bhqd,bhkd->bhqk', qT, kT) * SCALING + mask[:, None]
    if ATTN_LOGIT_SOFTCAP is not None:
        scores = jnp.tanh(scores / ATTN_LOGIT_SOFTCAP) * ATTN_LOGIT_SOFTCAP
    p = jax.nn.softmax(scores.astype(jnp.float32), axis=-1).astype(dtype)
    o = jnp.einsum('bhqk,bhkd->bhqd', p, vT)
    o = jnp.transpose(o, (0, 2, 1, 3)).reshape(B * S, NUM_HEADS * V_HEAD_DIM)
    out = (o @ params["w_o"]).reshape(B, S, HIDDEN)
    return jnp.where(jnp.isnan(out), jnp.zeros_like(out), out)


# ---------------- deterministic parameter init ----------------
def init_params(key):
    ks = jax.random.split(key, 8)
    # Linear weights stored as (in, out) for y = x @ W
    w_a_q = jax.random.normal(ks[0], (HIDDEN, TOTAL_Q_RANK), jnp.float32) * 0.1
    w_a_k = jax.random.normal(ks[1], (HIDDEN, NUM_KV_HEADS * K_RANK), jnp.float32) * 0.1
    w_a_v = jax.random.normal(ks[2], (HIDDEN, NUM_KV_HEADS * V_RANK), jnp.float32) * 0.1
    b_q = jax.random.normal(ks[3], (NUM_HEADS, Q_MAX_HEAD_RANK, HEAD_DIM), jnp.float32) * 0.5
    b_k = jax.random.normal(ks[4], (NUM_KV_HEADS, K_RANK, K_HEAD_DIM), jnp.float32) * 0.5
    b_v = jax.random.normal(ks[5], (NUM_KV_HEADS, V_RANK, V_HEAD_DIM), jnp.float32) * 0.5
    w_o = jax.random.normal(ks[6], (NUM_HEADS * V_HEAD_DIM, HIDDEN), jnp.float32) * 0.1
    # RMSNorm weights (module inits to zeros; small random here to exercise the path)
    q_norm_w = jax.random.normal(ks[7], (HEAD_DIM,), jnp.float32) * 0.05
    k_norm_w = jax.random.normal(jax.random.fold_in(key, 11), (K_HEAD_DIM,), jnp.float32) * 0.05
    return dict(w_a_q=w_a_q, w_a_k=w_a_k, w_a_v=w_a_v, b_q=b_q, b_k=b_k, b_v=b_v,
                w_o=w_o, q_norm_w=q_norm_w, k_norm_w=k_norm_w)


if __name__ == "__main__":
    key = jax.random.PRNGKey(0)
    kx, kp = jax.random.split(key)
    params = init_params(kp)

    hidden = jax.random.normal(kx, (BATCH, SEQ, HIDDEN), jnp.float32)

    # RoPE freqs (unused by the reference forward; kept for signature fidelity)
    full_freqs_cis = jnp.ones((SEQ, HEAD_DIM // 2), jnp.complex64)

    fwd = jax.jit(svd_tpa_attention_forward)
    out = jax.block_until_ready(fwd(hidden, full_freqs_cis, params))

    # Reference uses the same causal additive mask the kernel generates in-kernel.
    i = jnp.arange(SEQ)[:, None]
    j = jnp.arange(SEQ)[None, :]
    mask = jnp.where(j <= i, 0.0, MASK_VALUE).astype(jnp.float32)
    mask = jnp.broadcast_to(mask, (BATCH, SEQ, SEQ))
    ref = reference_forward(hidden, mask, params)

    assert out.shape == (BATCH, SEQ, HIDDEN)
    assert jnp.allclose(out, ref, atol=2e-4, rtol=2e-4), "Pallas output != JAX reference"

    print("KERNEL_OK")
</pallas_src>

<mosaic_0001>
module attributes {stable_mosaic.version = 11 : i64} {
  func.func @_svd_tpa_fused_kernel(%arg0: i32, %arg1: memref<1x8x32xf32, #tpu.memory_space<vmem>>, %arg2: memref<32x16xf32, #tpu.memory_space<vmem>>, %arg3: memref<8x16xf32, #tpu.memory_space<vmem>>, %arg4: memref<4x16xf32, #tpu.memory_space<vmem>>, %arg5: memref<4x16xf32, #tpu.memory_space<vmem>>, %arg6: memref<1x16xf32, #tpu.memory_space<vmem>>, %arg7: memref<1x16xf32, #tpu.memory_space<vmem>>, %arg8: memref<64x32xf32, #tpu.memory_space<vmem>>, %arg9: memref<1x8x32xf32, #tpu.memory_space<vmem>>, %arg10: memref<8x64xf32, #tpu.memory_space<vmem>>) attributes {dimension_semantics = [#tpu.dimension_semantics<parallel>], iteration_bounds = array<i64: 2>, scalar_prefetch = 0 : i64, scratch_operands = 1 : i64, tpu.core_type = #tpu.core_type<tc>, window_params = [{transform_indices = @transform_0, window_bounds = array<i64: 1, 8, 32>}, {pipeline_mode = #tpu.pipeline_mode<synchronous>, transform_indices = @transform_1, window_bounds = array<i64: 32, 16>}, {pipeline_mode = #tpu.pipeline_mode<synchronous>, transform_indices = @transform_2, window_bounds = array<i64: 8, 16>}, {pipeline_mode = #tpu.pipeline_mode<synchronous>, transform_indices = @transform_3, window_bounds = array<i64: 4, 16>}, {pipeline_mode = #tpu.pipeline_mode<synchronous>, transform_indices = @transform_4, window_bounds = array<i64: 4, 16>}, {pipeline_mode = #tpu.pipeline_mode<synchronous>, transform_indices = @transform_5, window_bounds = array<i64: 1, 16>}, {pipeline_mode = #tpu.pipeline_mode<synchronous>, transform_indices = @transform_6, window_bounds = array<i64: 1, 16>}, {pipeline_mode = #tpu.pipeline_mode<synchronous>, transform_indices = @transform_7, window_bounds = array<i64: 64, 32>}, {transform_indices = @transform_8, window_bounds = array<i64: 1, 8, 32>}]} {
    %c0 = arith.constant 0 : index
    %c0_0 = arith.constant 0 : index
    %c0_1 = arith.constant 0 : index
    %0 = vector.load %arg1[%c0, %c0_0, %c0_1] : memref<1x8x32xf32, #tpu.memory_space<vmem>>, vector<1x8x32xf32>
    %1 = vector.shape_cast %0 : vector<1x8x32xf32> to vector<8x32xf32>
    %c0_2 = arith.constant 0 : index
    %c0_3 = arith.constant 0 : index
    %2 = vector.load %arg2[%c0_2, %c0_3] : memref<32x16xf32, #tpu.memory_space<vmem>>, vector<32x16xf32>
    %cst = arith.constant dense<0.000000e+00> : vector<8x16xf32>
    %3 = tpu.matmul %1, %2, %cst {dimension_numbers = #tpu.dot_dimension_numbers<[1], [0], [0], [1], [0, 0, 1, 1], [], []>} : vector<8x32xf32>, vector<32x16xf32>, vector<8x16xf32> -> vector<8x16xf32>
    %4 = vector.extract_strided_slice %3 {offsets = [0, 0], sizes = [8, 8], strides = [1, 1]} : vector<8x16xf32> to vector<8x8xf32>
    %5 = vector.extract_strided_slice %3 {offsets = [0, 8], sizes = [8, 4], strides = [1, 1]} : vector<8x16xf32> to vector<8x4xf32>
    %6 = vector.extract_strided_slice %3 {offsets = [0, 12], sizes = [8, 4], strides = [1, 1]} : vector<8x16xf32> to vector<8x4xf32>
    %c0_4 = arith.constant 0 : index
    %c0_5 = arith.constant 0 : index
    %7 = vector.load %arg3[%c0_4, %c0_5] : memref<8x16xf32, #tpu.memory_space<vmem>>, vector<8x16xf32>
    %c0_6 = arith.constant 0 : index
    %c0_7 = arith.constant 0 : index
    %8 = vector.load %arg4[%c0_6, %c0_7] : memref<4x16xf32, #tpu.memory_space<vmem>>, vector<4x16xf32>
    %c0_8 = arith.constant 0 : index
    %c0_9 = arith.constant 0 : index
    %9 = vector.load %arg5[%c0_8, %c0_9] : memref<4x16xf32, #tpu.memory_space<vmem>>, vector<4x16xf32>
    %c0_10 = arith.constant 0 : index
    %c0_11 = arith.constant 0 : index
    %10 = vector.load %arg6[%c0_10, %c0_11] : memref<1x16xf32, #tpu.memory_space<vmem>>, vector<1x16xf32>
    %c0_12 = arith.constant 0 : index
    %c0_13 = arith.constant 0 : index
    %11 = vector.load %arg7[%c0_12, %c0_13] : memref<1x16xf32, #tpu.memory_space<vmem>>, vector<1x16xf32>
    %12 = vector.extract_strided_slice %4 {offsets = [0, 0], sizes = [8, 1], strides = [1, 1]} : vector<8x8xf32> to vector<8x1xf32>
    %13 = vector.extract_strided_slice %7 {offsets = [0, 0], sizes = [1, 16], strides = [1, 1]} : vector<8x16xf32> to vector<1x16xf32>
    %14 = vector.broadcast %12 : vector<8x1xf32> to vector<8x16xf32>
    %15 = vector.broadcast %13 : vector<1x16xf32> to vector<8x16xf32>
    %16 = arith.mulf %14, %15 : vector<8x16xf32>
    %17 = vector.extract_strided_slice %4 {offsets = [0, 1], sizes = [8, 1], strides = [1, 1]} : vector<8x8xf32> to vector<8x1xf32>
    %18 = vector.extract_strided_slice %7 {offsets = [1, 0], sizes = [1, 16], strides = [1, 1]} : vector<8x16xf32> to vector<1x16xf32>
    %19 = vector.broadcast %17 : vector<8x1xf32> to vector<8x16xf32>
    %20 = vector.broadcast %18 : vector<1x16xf32> to vector<8x16xf32>
    %21 = arith.mulf %19, %20 : vector<8x16xf32>
    %22 = arith.addf %16, %21 : vector<8x16xf32>
    %23 = vector.extract_strided_slice %4 {offsets = [0, 2], sizes = [8, 1], strides = [1, 1]} : vector<8x8xf32> to vector<8x1xf32>
    %24 = vector.extract_strided_slice %7 {offsets = [2, 0], sizes = [1, 16], strides = [1, 1]} : vector<8x16xf32> to vector<1x16xf32>
    %25 = vector.broadcast %23 : vector<8x1xf32> to vector<8x16xf32>
    %26 = vector.broadcast %24 : vector<1x16xf32> to vector<8x16xf32>
    %27 = arith.mulf %25, %26 : vector<8x16xf32>
    %28 = vector.extract_strided_slice %4 {offsets = [0, 3], sizes = [8, 1], strides = [1, 1]} : vector<8x8xf32> to vector<8x1xf32>
    %29 = vector.extract_strided_slice %7 {offsets = [3, 0], sizes = [1, 16], strides = [1, 1]} : vector<8x16xf32> to vector<1x16xf32>
    %30 = vector.broadcast %28 : vector<8x1xf32> to vector<8x16xf32>
    %31 = vector.broadcast %29 : vector<1x16xf32> to vector<8x16xf32>
    %32 = arith.mulf %30, %31 : vector<8x16xf32>
    %33 = arith.addf %27, %32 : vector<8x16xf32>
    %34 = vector.extract_strided_slice %4 {offsets = [0, 4], sizes = [8, 1], strides = [1, 1]} : vector<8x8xf32> to vector<8x1xf32>
    %35 = vector.extract_strided_slice %7 {offsets = [4, 0], sizes = [1, 16], strides = [1, 1]} : vector<8x16xf32> to vector<1x16xf32>
    %36 = vector.broadcast %34 : vector<8x1xf32> to vector<8x16xf32>
    %37 = vector.broadcast %35 : vector<1x16xf32> to vector<8x16xf32>
    %38 = arith.mulf %36, %37 : vector<8x16xf32>
    %39 = vector.extract_strided_slice %4 {offsets = [0, 5], sizes = [8, 1], strides = [1, 1]} : vector<8x8xf32> to vector<8x1xf32>
    %40 = vector.extract_strided_slice %7 {offsets = [5, 0], sizes = [1, 16], strides = [1, 1]} : vector<8x16xf32> to vector<1x16xf32>
    %41 = vector.broadcast %39 : vector<8x1xf32> to vector<8x16xf32>
    %42 = vector.broadcast %40 : vector<1x16xf32> to vector<8x16xf32>
    %43 = arith.mulf %41, %42 : vector<8x16xf32>
    %44 = arith.addf %38, %43 : vector<8x16xf32>
    %45 = vector.extract_strided_slice %4 {offsets = [0, 6], sizes = [8, 1], strides = [1, 1]} : vector<8x8xf32> to vector<8x1xf32>
    %46 = vector.extract_strided_slice %7 {offsets = [6, 0], sizes = [1, 16], strides = [1, 1]} : vector<8x16xf32> to vector<1x16xf32>
    %47 = vector.broadcast %45 : vector<8x1xf32> to vector<8x16xf32>
    %48 = vector.broadcast %46 : vector<1x16xf32> to vector<8x16xf32>
    %49 = arith.mulf %47, %48 : vector<8x16xf32>
    %50 = vector.extract_strided_slice %4 {offsets = [0, 7], sizes = [8, 1], strides = [1, 1]} : vector<8x8xf32> to vector<8x1xf32>
    %51 = vector.extract_strided_slice %7 {offsets = [7, 0], sizes = [1, 16], strides = [1, 1]} : vector<8x16xf32> to vector<1x16xf32>
    %52 = vector.broadcast %50 : vector<8x1xf32> to vector<8x16xf32>
    %53 = vector.broadcast %51 : vector<1x16xf32> to vector<8x16xf32>
    %54 = arith.mulf %52, %53 : vector<8x16xf32>
    %55 = arith.addf %49, %54 : vector<8x16xf32>
    %56 = tpu.concatenate %22, %33, %44, %55 in 0 : vector<8x16xf32>, vector<8x16xf32>, vector<8x16xf32>, vector<8x16xf32> -> vector<32x16xf32>
    %57 = arith.mulf %56, %56 : vector<32x16xf32>
    %cst_14 = arith.constant dense<0.000000e+00> : vector<32xf32>
    %58 = vector.multi_reduction <add>, %57, %cst_14 [1] : vector<32x16xf32> to vector<32xf32>
    %59 = vector.shape_cast %58 : vector<32xf32> to vector<32x1xf32>
    %cst_15 = arith.constant 1.600000e+01 : f32
    %60 = vector.broadcast %cst_15 : f32 to vector<32x1xf32>
    %61 = arith.divf %59, %60 : vector<32x1xf32>
    %cst_16 = arith.constant 9.99999997E-7 : f32
    %62 = vector.broadcast %cst_16 : f32 to vector<32x1xf32>
    %63 = arith.addf %61, %62 : vector<32x1xf32>
    %64 = math.rsqrt %63 : vector<32x1xf32>
    %65 = vector.broadcast %64 : vector<32x1xf32> to vector<32x16xf32>
    %66 = arith.mulf %56, %65 : vector<32x16xf32>
    %67 = vector.broadcast %10 : vector<1x16xf32> to vector<32x16xf32>
    %68 = arith.mulf %66, %67 : vector<32x16xf32>
    %69 = tpu.iota {dimensions = array<i32: 0>} : vector<8x8xi32>
    %70 = tpu.iota {dimensions = array<i32: 1>} : vector<8x8xi32>
    %71 = arith.cmpi sle, %70, %69 : vector<8x8xi32>
    %cst_17 = arith.constant 0.000000e+00 : f32
    %cst_18 = arith.constant -2.38197633E+38 : f32
    %72 = vector.broadcast %cst_17 : f32 to vector<8x8xf32>
    %73 = vector.broadcast %cst_18 : f32 to vector<8x8xf32>
    %74 = arith.select %71, %72, %73 : vector<8x8xi1>, vector<8x8xf32>
    %75 = tpu.concatenate %74, %74 in 0 : vector<8x8xf32>, vector<8x8xf32> -> vector<16x8xf32>
    %76 = vector.extract_strided_slice %5 {offsets = [0, 0], sizes = [8, 1], strides = [1, 1]} : vector<8x4xf32> to vector<8x1xf32>
    %77 = vector.extract_strided_slice %8 {offsets = [0, 0], sizes = [1, 16], strides = [1, 1]} : vector<4x16xf32> to vector<1x16xf32>
    %78 = vector.broadcast %76 : vector<8x1xf32> to vector<8x16xf32>
    %79 = vector.broadcast %77 : vector<1x16xf32> to vector<8x16xf32>
    %80 = arith.mulf %78, %79 : vector<8x16xf32>
    %81 = vector.extract_strided_slice %5 {offsets = [0, 1], sizes = [8, 1], strides = [1, 1]} : vector<8x4xf32> to vector<8x1xf32>
    %82 = vector.extract_strided_slice %8 {offsets = [1, 0], sizes = [1, 16], strides = [1, 1]} : vector<4x16xf32> to vector<1x16xf32>
    %83 = vector.broadcast %81 : vector<8x1xf32> to vector<8x16xf32>
    %84 = vector.broadcast %82 : vector<1x16xf32> to vector<8x16xf32>
    %85 = arith.mulf %83, %84 : vector<8x16xf32>
    %86 = arith.addf %80, %85 : vector<8x16xf32>
    %87 = vector.extract_strided_slice %6 {offsets = [0, 0], sizes = [8, 1], strides = [1, 1]} : vector<8x4xf32> to vector<8x1xf32>
    %88 = vector.extract_strided_slice %9 {offsets = [0, 0], sizes = [1, 16], strides = [1, 1]} : vector<4x16xf32> to vector<1x16xf32>
    %89 = vector.broadcast %87 : vector<8x1xf32> to vector<8x16xf32>
    %90 = vector.broadcast %88 : vector<1x16xf32> to vector<8x16xf32>
    %91 = arith.mulf %89, %90 : vector<8x16xf32>
    %92 = vector.extract_strided_slice %6 {offsets = [0, 1], sizes = [8, 1], strides = [1, 1]} : vector<8x4xf32> to vector<8x1xf32>
    %93 = vector.extract_strided_slice %9 {offsets = [1, 0], sizes = [1, 16], strides = [1, 1]} : vector<4x16xf32> to vector<1x16xf32>
    %94 = vector.broadcast %92 : vector<8x1xf32> to vector<8x16xf32>
    %95 = vector.broadcast %93 : vector<1x16xf32> to vector<8x16xf32>
    %96 = arith.mulf %94, %95 : vector<8x16xf32>
    %97 = arith.addf %91, %96 : vector<8x16xf32>
    %98 = arith.mulf %86, %86 : vector<8x16xf32>
    %cst_19 = arith.constant dense<0.000000e+00> : vector<8xf32>
    %99 = vector.multi_reduction <add>, %98, %cst_19 [1] : vector<8x16xf32> to vector<8xf32>
    %100 = vector.shape_cast %99 : vector<8xf32> to vector<8x1xf32>
    %cst_20 = arith.constant 1.600000e+01 : f32
    %101 = vector.broadcast %cst_20 : f32 to vector<8x1xf32>
    %102 = arith.divf %100, %101 : vector<8x1xf32>
    %cst_21 = arith.constant 9.99999997E-7 : f32
    %103 = vector.broadcast %cst_21 : f32 to vector<8x1xf32>
    %104 = arith.addf %102, %103 : vector<8x1xf32>
    %105 = math.rsqrt %104 : vector<8x1xf32>
    %106 = vector.broadcast %105 : vector<8x1xf32> to vector<8x16xf32>
    %107 = arith.mulf %86, %106 : vector<8x16xf32>
    %108 = vector.broadcast %11 : vector<1x16xf32> to vector<8x16xf32>
    %109 = arith.mulf %107, %108 : vector<8x16xf32>
    %110 = vector.extract_strided_slice %68 {offsets = [0, 0], sizes = [16, 16], strides = [1, 1]} : vector<32x16xf32> to vector<16x16xf32>
    %cst_22 = arith.constant dense<0.000000e+00> : vector<16x8xf32>
    %111 = tpu.matmul %110, %109, %cst_22 {dimension_numbers = #tpu.dot_dimension_numbers<[1], [1], [0], [0], [0, 0, 1, 0], [], []>} : vector<16x16xf32>, vector<8x16xf32>, vector<16x8xf32> -> vector<16x8xf32>
    %112 = arith.addf %111, %75 : vector<16x8xf32>
    %cst_23 = arith.constant dense<0xFF800000> : vector<16xf32>
    %113 = vector.multi_reduction <maximumf>, %112, %cst_23 [1] : vector<16x8xf32> to vector<16xf32>
    %114 = vector.shape_cast %113 : vector<16xf32> to vector<16x1xf32>
    %115 = vector.broadcast %114 : vector<16x1xf32> to vector<16x8xf32>
    %116 = arith.subf %112, %115 : vector<16x8xf32>
    %117 = math.exp %116 : vector<16x8xf32>
    %cst_24 = arith.constant dense<0.000000e+00> : vector<16xf32>
    %118 = vector.multi_reduction <add>, %117, %cst_24 [1] : vector<16x8xf32> to vector<16xf32>
    %119 = vector.shape_cast %118 : vector<16xf32> to vector<16x1xf32>
    %120 = tpu.reciprocal %119 {approx = true} : vector<16x1xf32> -> vector<16x1xf32>
    %121 = arith.mulf %119, %120 : vector<16x1xf32>
    %cst_25 = arith.constant 2.000000e+00 : f32
    %122 = vector.broadcast %cst_25 : f32 to vector<16x1xf32>
    %123 = arith.subf %122, %121 : vector<16x1xf32>
    %124 = arith.mulf %120, %123 : vector<16x1xf32>
    %125 = arith.mulf %119, %124 : vector<16x1xf32>
    %cst_26 = arith.constant 2.000000e+00 : f32
    %126 = vector.broadcast %cst_26 : f32 to vector<16x1xf32>
    %127 = arith.subf %126, %125 : vector<16x1xf32>
    %128 = arith.mulf %124, %127 : vector<16x1xf32>
    %129 = vector.broadcast %128 : vector<16x1xf32> to vector<16x8xf32>
    %130 = arith.mulf %117, %129 : vector<16x8xf32>
    %cst_27 = arith.constant dense<0.000000e+00> : vector<16x16xf32>
    %131 = tpu.matmul %130, %97, %cst_27 {dimension_numbers = #tpu.dot_dimension_numbers<[1], [0], [0], [1], [0, 0, 1, 1], [], []>} : vector<16x8xf32>, vector<8x16xf32>, vector<16x16xf32> -> vector<16x16xf32>
    %132 = vector.extract_strided_slice %131 {offsets = [0, 0], sizes = [8, 16], strides = [1, 1]} : vector<16x16xf32> to vector<8x16xf32>
    %c0_28 = arith.constant 0 : index
    %c0_29 = arith.constant 0 : index
    %133 = vector.load %arg10[%c0_28, %c0_29] : memref<8x64xf32, #tpu.memory_space<vmem>>, vector<8x16xf32>
    tpu.vector_store %arg10[%c0_28, %c0_29], %132 {strides = array<i32>} : memref<8x64xf32, #tpu.memory_space<vmem>>, vector<8x16xf32>,
    %134 = vector.extract_strided_slice %131 {offsets = [8, 0], sizes = [8, 16], strides = [1, 1]} : vector<16x16xf32> to vector<8x16xf32>
    %c0_30 = arith.constant 0 : index
    %c16 = arith.constant 16 : index
    %135 = vector.load %arg10[%c0_30, %c16] : memref<8x64xf32, #tpu.memory_space<vmem>>, vector<8x16xf32>
    tpu.vector_store %arg10[%c0_30, %c16], %134 {strides = array<i32>} : memref<8x64xf32, #tpu.memory_space<vmem>>, vector<8x16xf32>,
    %136 = vector.extract_strided_slice %5 {offsets = [0, 2], sizes = [8, 1], strides = [1, 1]} : vector<8x4xf32> to vector<8x1xf32>
    %137 = vector.extract_strided_slice %8 {offsets = [2, 0], sizes = [1, 16], strides = [1, 1]} : vector<4x16xf32> to vector<1x16xf32>
    %138 = vector.broadcast %136 : vector<8x1xf32> to vector<8x16xf32>
    %139 = vector.broadcast %137 : vector<1x16xf32> to vector<8x16xf32>
    %140 = arith.mulf %138, %139 : vector<8x16xf32>
    %141 = vector.extract_strided_slice %5 {offsets = [0, 3], sizes = [8, 1], strides = [1, 1]} : vector<8x4xf32> to vector<8x1xf32>
    %142 = vector.extract_strided_slice %8 {offsets = [3, 0], sizes = [1, 16], strides = [1, 1]} : vector<4x16xf32> to vector<1x16xf32>
    %143 = vector.broadcast %141 : vector<8x1xf32> to vector<8x16xf32>
    %144 = vector.broadcast %142 : vector<1x16xf32> to vector<8x16xf32>
    %145 = arith.mulf %143, %144 : vector<8x16xf32>
    %146 = arith.addf %140, %145 : vector<8x16xf32>
    %147 = vector.extract_strided_slice %6 {offsets = [0, 2], sizes = [8, 1], strides = [1, 1]} : vector<8x4xf32> to vector<8x1xf32>
    %148 = vector.extract_strided_slice %9 {offsets = [2, 0], sizes = [1, 16], strides = [1, 1]} : vector<4x16xf32> to vector<1x16xf32>
    %149 = vector.broadcast %147 : vector<8x1xf32> to vector<8x16xf32>
    %150 = vector.broadcast %148 : vector<1x16xf32> to vector<8x16xf32>
    %151 = arith.mulf %149, %150 : vector<8x16xf32>
    %152 = vector.extract_strided_slice %6 {offsets = [0, 3], sizes = [8, 1], strides = [1, 1]} : vector<8x4xf32> to vector<8x1xf32>
    %153 = vector.extract_strided_slice %9 {offsets = [3, 0], sizes = [1, 16], strides = [1, 1]} : vector<4x16xf32> to vector<1x16xf32>
    %154 = vector.broadcast %152 : vector<8x1xf32> to vector<8x16xf32>
    %155 = vector.broadcast %153 : vector<1x16xf32> to vector<8x16xf32>
    %156 = arith.mulf %154, %155 : vector<8x16xf32>
    %157 = arith.addf %151, %156 : vector<8x16xf32>
    %158 = arith.mulf %146, %146 : vector<8x16xf32>
    %cst_31 = arith.constant dense<0.000000e+00> : vector<8xf32>
    %159 = vector.multi_reduction <add>, %158, %cst_31 [1] : vector<8x16xf32> to vector<8xf32>
    %160 = vector.shape_cast %159 : vector<8xf32> to vector<8x1xf32>
    %cst_32 = arith.constant 1.600000e+01 : f32
    %161 = vector.broadcast %cst_32 : f32 to vector<8x1xf32>
    %162 = arith.divf %160, %161 : vector<8x1xf32>
    %cst_33 = arith.constant 9.99999997E-7 : f32
    %163 = vector.broadcast %cst_33 : f32 to vector<8x1xf32>
    %164 = arith.addf %162, %163 : vector<8x1xf32>
    %165 = math.rsqrt %164 : vector<8x1xf32>
    %166 = vector.broadcast %165 : vector<8x1xf32> to vector<8x16xf32>
    %167 = arith.mulf %146, %166 : vector<8x16xf32>
    %168 = vector.broadcast %11 : vector<1x16xf32> to vector<8x16xf32>
    %169 = arith.mulf %167, %168 : vector<8x16xf32>
    %170 = vector.extract_strided_slice %68 {offsets = [16, 0], sizes = [16, 16], strides = [1, 1]} : vector<32x16xf32> to vector<16x16xf32>
    %cst_34 = arith.constant dense<0.000000e+00> : vector<16x8xf32>
    %171 = tpu.matmul %170, %169, %cst_34 {dimension_numbers = #tpu.dot_dimension_numbers<[1], [1], [0], [0], [0, 0, 1, 0], [], []>} : vector<16x16xf32>, vector<8x16xf32>, vector<16x8xf32> -> vector<16x8xf32>
    %172 = arith.addf %171, %75 : vector<16x8xf32>
    %cst_35 = arith.constant dense<0xFF800000> : vector<16xf32>
    %173 = vector.multi_reduction <maximumf>, %172, %cst_35 [1] : vector<16x8xf32> to vector<16xf32>
    %174 = vector.shape_cast %173 : vector<16xf32> to vector<16x1xf32>
    %175 = vector.broadcast %174 : vector<16x1xf32> to vector<16x8xf32>
    %176 = arith.subf %172, %175 : vector<16x8xf32>
    %177 = math.exp %176 : vector<16x8xf32>
    %cst_36 = arith.constant dense<0.000000e+00> : vector<16xf32>
    %178 = vector.multi_reduction <add>, %177, %cst_36 [1] : vector<16x8xf32> to vector<16xf32>
    %179 = vector.shape_cast %178 : vector<16xf32> to vector<16x1xf32>
    %180 = tpu.reciprocal %179 {approx = true} : vector<16x1xf32> -> vector<16x1xf32>
    %181 = arith.mulf %179, %180 : vector<16x1xf32>
    %cst_37 = arith.constant 2.000000e+00 : f32
    %182 = vector.broadcast %cst_37 : f32 to vector<16x1xf32>
    %183 = arith.subf %182, %181 : vector<16x1xf32>
    %184 = arith.mulf %180, %183 : vector<16x1xf32>
    %185 = arith.mulf %179, %184 : vector<16x1xf32>
    %cst_38 = arith.constant 2.000000e+00 : f32
    %186 = vector.broadcast %cst_38 : f32 to vector<16x1xf32>
    %187 = arith.subf %186, %185 : vector<16x1xf32>
    %188 = arith.mulf %184, %187 : vector<16x1xf32>
    %189 = vector.broadcast %188 : vector<16x1xf32> to vector<16x8xf32>
    %190 = arith.mulf %177, %189 : vector<16x8xf32>
    %cst_39 = arith.constant dense<0.000000e+00> : vector<16x16xf32>
    %191 = tpu.matmul %190, %157, %cst_39 {dimension_numbers = #tpu.dot_dimension_numbers<[1], [0], [0], [1], [0, 0, 1, 1], [], []>} : vector<16x8xf32>, vector<8x16xf32>, vector<16x16xf32> -> vector<16x16xf32>
    %192 = vector.extract_strided_slice %191 {offsets = [0, 0], sizes = [8, 16], strides = [1, 1]} : vector<16x16xf32> to vector<8x16xf32>
    %c0_40 = arith.constant 0 : index
    %c32 = arith.constant 32 : index
    %193 = vector.load %arg10[%c0_40, %c32] : memref<8x64xf32, #tpu.memory_space<vmem>>, vector<8x16xf32>
    tpu.vector_store %arg10[%c0_40, %c32], %192 {strides = array<i32>} : memref<8x64xf32, #tpu.memory_space<vmem>>, vector<8x16xf32>,
    %194 = vector.extract_strided_slice %191 {offsets = [8, 0], sizes = [8, 16], strides = [1, 1]} : vector<16x16xf32> to vector<8x16xf32>
    %c0_41 = arith.constant 0 : index
    %c48 = arith.constant 48 : index
    %195 = vector.load %arg10[%c0_41, %c48] : memref<8x64xf32, #tpu.memory_space<vmem>>, vector<8x16xf32>
    tpu.vector_store %arg10[%c0_41, %c48], %194 {strides = array<i32>} : memref<8x64xf32, #tpu.memory_space<vmem>>, vector<8x16xf32>,
    %c0_42 = arith.constant 0 : index
    %c0_43 = arith.constant 0 : index
    %196 = vector.load %arg10[%c0_42, %c0_43] : memref<8x64xf32, #tpu.memory_space<vmem>>, vector<8x64xf32>
    %c0_44 = arith.constant 0 : index
    %c0_45 = arith.constant 0 : index
    %197 = vector.load %arg8[%c0_44, %c0_45] : memref<64x32xf32, #tpu.memory_space<vmem>>, vector<64x32xf32>
    %cst_46 = arith.constant dense<0.000000e+00> : vector<8x32xf32>
    %198 = tpu.matmul %196, %197, %cst_46 {dimension_numbers = #tpu.dot_dimension_numbers<[1], [0], [0], [1], [0, 0, 1, 1], [], []>} : vector<8x64xf32>, vector<64x32xf32>, vector<8x32xf32> -> vector<8x32xf32>
    %c0_47 = arith.constant 0 : index
    %c0_48 = arith.constant 0 : index
    %c0_49 = arith.constant 0 : index
    %199 = vector.load %arg9[%c0_47, %c0_48, %c0_49] : memref<1x8x32xf32, #tpu.memory_space<vmem>>, vector<1x8x32xf32>
    %200 = vector.shape_cast %199 : vector<1x8x32xf32> to vector<8x32xf32>
    %201 = vector.shape_cast %198 : vector<8x32xf32> to vector<1x8x32xf32>
    tpu.vector_store %arg9[%c0_47, %c0_48, %c0_49], %201 {strides = array<i32>} : memref<1x8x32xf32, #tpu.memory_space<vmem>>, vector<1x8x32xf32>,
    return
  }
  func.func @transform_0(%arg0: i32) -> (i32, i32, i32) {
    %c0_i32 = arith.constant 0 : i32
    %c0_i32_0 = arith.constant 0 : i32
    %c0_i32_1 = arith.constant 0 : i32
    return %arg0, %c0_i32, %c0_i32_0 : i32, i32, i32
  }
  func.func @transform_1(%arg0: i32) -> (i32, i32) {
    %c0_i32 = arith.constant 0 : i32
    %c0_i32_0 = arith.constant 0 : i32
    %c0_i32_1 = arith.constant 0 : i32
    return %c0_i32, %c0_i32_0 : i32, i32
  }
  func.func @transform_2(%arg0: i32) -> (i32, i32) {
    %c0_i32 = arith.constant 0 : i32
    %c0_i32_0 = arith.constant 0 : i32
    %c0_i32_1 = arith.constant 0 : i32
    return %c0_i32, %c0_i32_0 : i32, i32
  }
  func.func @transform_3(%arg0: i32) -> (i32, i32) {
    %c0_i32 = arith.constant 0 : i32
    %c0_i32_0 = arith.constant 0 : i32
    %c0_i32_1 = arith.constant 0 : i32
    return %c0_i32, %c0_i32_0 : i32, i32
  }
  func.func @transform_4(%arg0: i32) -> (i32, i32) {
    %c0_i32 = arith.constant 0 : i32
    %c0_i32_0 = arith.constant 0 : i32
    %c0_i32_1 = arith.constant 0 : i32
    return %c0_i32, %c0_i32_0 : i32, i32
  }
  func.func @transform_5(%arg0: i32) -> (i32, i32) {
    %c0_i32 = arith.constant 0 : i32
    %c0_i32_0 = arith.constant 0 : i32
    %c0_i32_1 = arith.constant 0 : i32
    return %c0_i32, %c0_i32_0 : i32, i32
  }
  func.func @transform_6(%arg0: i32) -> (i32, i32) {
    %c0_i32 = arith.constant 0 : i32
    %c0_i32_0 = arith.constant 0 : i32
    %c0_i32_1 = arith.constant 0 : i32
    return %c0_i32, %c0_i32_0 : i32, i32
  }
  func.func @transform_7(%arg0: i32) -> (i32, i32) {
    %c0_i32 = arith.constant 0 : i32
    %c0_i32_0 = arith.constant 0 : i32
    %c0_i32_1 = arith.constant 0 : i32
    return %c0_i32, %c0_i32_0 : i32, i32
  }
  func.func @transform_8(%arg0: i32) -> (i32, i32, i32) {
    %c0_i32 = arith.constant 0 : i32
    %c0_i32_0 = arith.constant 0 : i32
    %c0_i32_1 = arith.constant 0 : i32
    return %arg0, %c0_i32, %c0_i32_0 : i32, i32, i32
  }
}

</mosaic_0001>

<llo_original>
// kernel: svd_tpa_attention_forward.1
$region0: #{svd_tpa_attention_forward.1}
  #allocation0 [shape = 'u32[]', space=smem, size = 0x4, offset = 0x4, fixed_abs, tag = 'smem constant byte address 0x4 - core index']
  #allocation1 [shape = 'u32[72,128]{1,0:T(1,128)}', space=vmem, size = 0x9000, scoped, tag = 'internal scratch']
  #allocation2 [shape = 'f32[8,64]{1,0:T(8,128)}', space=vmem, size = 0x1000, scoped, tag = 'scratch operand']
  %s0 = inlined_call_operand.vmem [shape: f32[2,8,32], index: 0, kind: input, shape index: {}]
  %s1 = inlined_call_operand.vmem [shape: f32[32,16], index: 1, kind: input, shape index: {}]
  %s2 = inlined_call_operand.vmem [shape: f32[8,16], index: 2, kind: input, shape index: {}]
  %s3 = inlined_call_operand.vmem [shape: f32[4,16], index: 3, kind: input, shape index: {}]
  %s4 = inlined_call_operand.vmem [shape: f32[4,16], index: 4, kind: input, shape index: {}]
  %s5 = inlined_call_operand.vmem [shape: f32[1,16], index: 5, kind: input, shape index: {}]
  %s6 = inlined_call_operand.vmem [shape: f32[1,16], index: 6, kind: input, shape index: {}]
  %s7 = inlined_call_operand.vmem [shape: f32[64,32], index: 7, kind: input, shape index: {}]
  %s8 = inlined_call_operand.hbm [shape: f32[2,8,32], index: 8, kind: output, shape index: {}]
  %s9 = sld [smem:[#allocation0]]
  $region65: #{svd_tpa_attention_forward.1} parent=0
    _
  %s11 = ssub.s32 1, %s9
  %s12 = scalar_select 0, %s11, %s9
  $region1: #{svd_tpa_attention_forward.1} parent=0
    #allocation3 [shape = 'u8[8192]{0}', space=vmem, size = 0x2000, scoped, tag = 'output window, operand 0']
    #allocation4 [shape = 's32[2]{0}', space=sflag, size = 0x8, scoped, tag = 'scoped memory for svd_tpa_attention_forward.1']
    %13 = vsyncpa [#allocation4], 0
    %s14 = scalar_lea.sflag [#allocation4], 1
    %15 = vsyncpa %s14, 0
    loop: start=0, step=1, limit=4
    $region2: #{svd_tpa_attention_forward.1} parent=1 // loop_pre_header
      _
    $region3: #{svd_tpa_attention_forward.1} parent=1 // loop_header
      %s17 = sphi 0, %s21
      %p18 = scmp.ge.s32.totalorder %s17, 4
      %s27 = sphi 0, %s29
      %s30 = sphi 0, %s27
      %s31 = sphi 0, %s30
      %s47 = sphi 0, %s31
      %s51 = sphi 0, %s51
      %s53 = sphi 0, %s51
      %s54 = sphi 0, %s53
      %s68 = sphi 0, %s54
      %s72 = sphi 0, %s72
      %s74 = sphi 0, %s72
      %s75 = sphi 0, %s74
      %s89 = sphi 0, %s75
      %s93 = sphi 0, %s93
      %s95 = sphi 0, %s93
      %s96 = sphi 0, %s95
      %s110 = sphi 0, %s96
      %s114 = sphi 0, %s114
      %s116 = sphi 0, %s114
      %s117 = sphi 0, %s116
      %s131 = sphi 0, %s117
      %s135 = sphi 0, %s135
      %s137 = sphi 0, %s135
      %s138 = sphi 0, %s137
      %s152 = sphi 0, %s138
      %s156 = sphi 0, %s156
      %s158 = sphi 0, %s156
      %s159 = sphi 0, %s158
      %s173 = sphi 0, %s159
      %s177 = sphi 0, %s177
      %s179 = sphi 0, %s177
      %s180 = sphi 0, %s179
      %s194 = sphi 0, %s180
      %s200 = sphi 0, %s202
      %s203 = sphi 0, %s200
      %s204 = sphi 0, %s203
      %s220 = sphi 0, %s204
    $region4: #{svd_tpa_attention_forward.1} parent=1 // loop_header_branch
      %20 = sbr.rel (%p18) target = $region8
    $region5: #{svd_tpa_attention_forward.1} parent=1 // loop_body
      %s22 = ssub.s32 %s17, 1
      %s23 = ssub.s32 %s17, 2
      %s24 = sadd.s32 %s17, 1
      %s25 = ssub.s32 %s17, %s24
      %p26 = scmp.eq.s32.totalorder %s25, 0
      %s28 = sadd.s32 %s27, 1
      %s29 = scalar_select %p26, %s27, %s28
      %p32 = pneg %p26
      %p33 = scmp.eq.s32.totalorder %s17, 1
      %p34 = por %p32, %p33
      %p35 = scmp.ne.s32.totalorder %s27, %s30
      %p36 = scmp.eq.s32.totalorder %s17, 0
      %p37 = por %p35, %p36
      %p38 = scmp.ne.s32.totalorder %s27, %s30
      %p39 = scmp.eq.s32.totalorder %s22, 1
      %p40 = por %p38, %p39
      %p41 = scmp.ne.s32.totalorder %s30, %s31
      %p42 = scmp.eq.s32.totalorder %s22, 0
      %p43 = por %p41, %p42
      %p44 = scmp.ne.s32.totalorder %s30, %s31
      %p45 = scmp.eq.s32.totalorder %s23, 1
      %p46 = por %p44, %p45
      %p48 = scmp.ne.s32.totalorder %s31, %s47
      %p49 = scmp.eq.s32.totalorder %s23, 0
      %p50 = por %p48, %p49
      %s52 = sadd.s32 %s51, 1
      %p55 = scmp.eq.s32.totalorder %s17, 1
      %p56 = scmp.ne.s32.totalorder %s51, %s53
      %p57 = scmp.eq.s32.totalorder %s17, 0
      %p58 = por %p56, %p57
      %p59 = scmp.ne.s32.totalorder %s51, %s53
      %p60 = scmp.eq.s32.totalorder %s22, 1
      %p61 = por %p59, %p60
      %p62 = scmp.ne.s32.totalorder %s53, %s54
      %p63 = scmp.eq.s32.totalorder %s22, 0
      %p64 = por %p62, %p63
      %p65 = scmp.ne.s32.totalorder %s53, %s54
      %p66 = scmp.eq.s32.totalorder %s23, 1
      %p67 = por %p65, %p66
      %p69 = scmp.ne.s32.totalorder %s54, %s68
      %p70 = scmp.eq.s32.totalorder %s23, 0
      %p71 = por %p69, %p70
      %s73 = sadd.s32 %s72, 1
      %p76 = scmp.eq.s32.totalorder %s17, 1
      %p77 = scmp.ne.s32.totalorder %s72, %s74
      %p78 = scmp.eq.s32.totalorder %s17, 0
      %p79 = por %p77, %p78
      %p80 = scmp.ne.s32.totalorder %s72, %s74
      %p81 = scmp.eq.s32.totalorder %s22, 1
      %p82 = por %p80, %p81
      %p83 = scmp.ne.s32.totalorder %s74, %s75
      %p84 = scmp.eq.s32.totalorder %s22, 0
      %p85 = por %p83, %p84
      %p86 = scmp.ne.s32.totalorder %s74, %s75
      %p87 = scmp.eq.s32.totalorder %s23, 1
      %p88 = por %p86, %p87
      %p90 = scmp.ne.s32.totalorder %s75, %s89
      %p91 = scmp.eq.s32.totalorder %s23, 0
      %p92 = por %p90, %p91
      %s94 = sadd.s32 %s93, 1
      %p97 = scmp.eq.s32.totalorder %s17, 1
      %p98 = scmp.ne.s32.totalorder %s93, %s95
      %p99 = scmp.eq.s32.totalorder %s17, 0
      %p100 = por %p98, %p99
      %p101 = scmp.ne.s32.totalorder %s93, %s95
      %p102 = scmp.eq.s32.totalorder %s22, 1
      %p103 = por %p101, %p102
      %p104 = scmp.ne.s32.totalorder %s95, %s96
      %p105 = scmp.eq.s32.totalorder %s22, 0
      %p106 = por %p104, %p105
      %p107 = scmp.ne.s32.totalorder %s95, %s96
      %p108 = scmp.eq.s32.totalorder %s23, 1
      %p109 = por %p107, %p108
      %p111 = scmp.ne.s32.totalorder %s96, %s110
      %p112 = scmp.eq.s32.totalorder %s23, 0
      %p113 = por %p111, %p112
      %s115 = sadd.s32 %s114, 1
      %p118 = scmp.eq.s32.totalorder %s17, 1
      %p119 = scmp.ne.s32.totalorder %s114, %s116
      %p120 = scmp.eq.s32.totalorder %s17, 0
      %p121 = por %p119, %p120
      %p122 = scmp.ne.s32.totalorder %s114, %s116
      %p123 = scmp.eq.s32.totalorder %s22, 1
      %p124 = por %p122, %p123
      %p125 = scmp.ne.s32.totalorder %s116, %s117
      %p126 = scmp.eq.s32.totalorder %s22, 0
      %p127 = por %p125, %p126
      %p128 = scmp.ne.s32.totalorder %s116, %s117
      %p129 = scmp.eq.s32.totalorder %s23, 1
      %p130 = por %p128, %p129
      %p132 = scmp.ne.s32.totalorder %s117, %s131
      %p133 = scmp.eq.s32.totalorder %s23, 0
      %p134 = por %p132, %p133
      %s136 = sadd.s32 %s135, 1
      %p139 = scmp.eq.s32.totalorder %s17, 1
      %p140 = scmp.ne.s32.totalorder %s135, %s137
      %p141 = scmp.eq.s32.totalorder %s17, 0
      %p142 = por %p140, %p141
      %p143 = scmp.ne.s32.totalorder %s135, %s137
      %p144 = scmp.eq.s32.totalorder %s22, 1
      %p145 = por %p143, %p144
      %p146 = scmp.ne.s32.totalorder %s137, %s138
      %p147 = scmp.eq.s32.totalorder %s22, 0
      %p148 = por %p146, %p147
      %p149 = scmp.ne.s32.totalorder %s137, %s138
      %p150 = scmp.eq.s32.totalorder %s23, 1
      %p151 = por %p149, %p150
      %p153 = scmp.ne.s32.totalorder %s138, %s152
      %p154 = scmp.eq.s32.totalorder %s23, 0
      %p155 = por %p153, %p154
      %s157 = sadd.s32 %s156, 1
      %p160 = scmp.eq.s32.totalorder %s17, 1
      %p161 = scmp.ne.s32.totalorder %s156, %s158
      %p162 = scmp.eq.s32.totalorder %s17, 0
      %p163 = por %p161, %p162
      %p164 = scmp.ne.s32.totalorder %s156, %s158
      %p165 = scmp.eq.s32.totalorder %s22, 1
      %p166 = por %p164, %p165
      %p167 = scmp.ne.s32.totalorder %s158, %s159
      %p168 = scmp.eq.s32.totalorder %s22, 0
      %p169 = por %p167, %p168
      %p170 = scmp.ne.s32.totalorder %s158, %s159
      %p171 = scmp.eq.s32.totalorder %s23, 1
      %p172 = por %p170, %p171
      %p174 = scmp.ne.s32.totalorder %s159, %s173
      %p175 = scmp.eq.s32.totalorder %s23, 0
      %p176 = por %p174, %p175
      %s178 = sadd.s32 %s177, 1
      %p181 = scmp.eq.s32.totalorder %s17, 1
      %p182 = scmp.ne.s32.totalorder %s177, %s179
      %p183 = scmp.eq.s32.totalorder %s17, 0
      %p184 = por %p182, %p183
      %p185 = scmp.ne.s32.totalorder %s177, %s179
      %p186 = scmp.eq.s32.totalorder %s22, 1
      %p187 = por %p185, %p186
      %p188 = scmp.ne.s32.totalorder %s179, %s180
      %p189 = scmp.eq.s32.totalorder %s22, 0
      %p190 = por %p188, %p189
      %p191 = scmp.ne.s32.totalorder %s179, %s180
      %p192 = scmp.eq.s32.totalorder %s23, 1
      %p193 = por %p191, %p192
      %p195 = scmp.ne.s32.totalorder %s180, %s194
      %p196 = scmp.eq.s32.totalorder %s23, 0
      %p197 = por %p195, %p196
      %s198 = ssub.s32 %s17, %s24
      %p199 = scmp.eq.s32.totalorder %s198, 0
      %s201 = sadd.s32 %s200, 1
      %s202 = scalar_select %p199, %s200, %s201
      %p205 = pneg %p199
      %p206 = scmp.eq.s32.totalorder %s17, 1
      %p207 = por %p205, %p206
      %p208 = scmp.ne.s32.totalorder %s200, %s203
      %p209 = scmp.eq.s32.totalorder %s17, 0
      %p210 = por %p208, %p209
      %p211 = scmp.ne.s32.totalorder %s200, %s203
      %p212 = scmp.eq.s32.totalorder %s22, 1
      %p213 = por %p211, %p212
      %p214 = scmp.ne.s32.totalorder %s203, %s204
      %p215 = scmp.eq.s32.totalorder %s22, 0
      %p216 = por %p214, %p215
      %p217 = scmp.ne.s32.totalorder %s203, %s204
      %p218 = scmp.eq.s32.totalorder %s23, 1
      %p219 = por %p217, %p218
      %p221 = scmp.ne.s32.totalorder %s204, %s220
      %p222 = scmp.eq.s32.totalorder %s23, 0
      %p223 = por %p221, %p222
      %p224 = scmp.le.s32.totalorder 1, %s17
      %p225 = scmp.lt.s32.totalorder %s17, 3
      %p226 = pnand %p224, %p225
      %p227 = pneg %p226
      // Predicated region
      $region9: #{svd_tpa_attention_forward.1} parent=5 // pred_check
        _
      $region10: #{svd_tpa_attention_forward.1} parent=5 // pred_check_branch
        %229 = sbr.rel (%p226) target = $region12
      $region11: #{svd_tpa_attention_forward.1} parent=5 // pred_region
        %s230 = ssub.s32 %s17, 1
        // Predicated region
        $region13: #{svd_tpa_attention_forward.1} parent=11 // pred_check
          %p231 = pneg %p64
        $region14: #{svd_tpa_attention_forward.1} parent=11 // pred_check_branch
          %233 = sbr.rel (%p231) target = $region16
        $region15: #{svd_tpa_attention_forward.1} parent=11 // pred_region
          _
        $region16: #{svd_tpa_attention_forward.1} parent=11 // pred_fallthru
          _
        // Predicated region
        $region17: #{svd_tpa_attention_forward.1} parent=11 // pred_check
          %p234 = pneg %p85
        $region18: #{svd_tpa_attention_forward.1} parent=11 // pred_check_branch
          %236 = sbr.rel (%p234) target = $region20
        $region19: #{svd_tpa_attention_forward.1} parent=11 // pred_region
          _
        $region20: #{svd_tpa_attention_forward.1} parent=11 // pred_fallthru
          _
        // Predicated region
        $region21: #{svd_tpa_attention_forward.1} parent=11 // pred_check
          %p237 = pneg %p106
        $region22: #{svd_tpa_attention_forward.1} parent=11 // pred_check_branch
          %239 = sbr.rel (%p237) target = $region24
        $region23: #{svd_tpa_attention_forward.1} parent=11 // pred_region
          _
        $region24: #{svd_tpa_attention_forward.1} parent=11 // pred_fallthru
          _
        // Predicated region
        $region25: #{svd_tpa_attention_forward.1} parent=11 // pred_check
          %p240 = pneg %p127
        $region26: #{svd_tpa_attention_forward.1} parent=11 // pred_check_branch
          %242 = sbr.rel (%p240) target = $region28
        $region27: #{svd_tpa_attention_forward.1} parent=11 // pred_region
          _
        $region28: #{svd_tpa_attention_forward.1} parent=11 // pred_fallthru
          _
        // Predicated region
        $region29: #{svd_tpa_attention_forward.1} parent=11 // pred_check
          %p243 = pneg %p148
        $region30: #{svd_tpa_attention_forward.1} parent=11 // pred_check_branch
          %245 = sbr.rel (%p243) target = $region32
        $region31: #{svd_tpa_attention_forward.1} parent=11 // pred_region
          _
        $region32: #{svd_tpa_attention_forward.1} parent=11 // pred_fallthru
          _
        // Predicated region
        $region33: #{svd_tpa_attention_forward.1} parent=11 // pred_check
          %p246 = pneg %p169
        $region34: #{svd_tpa_attention_forward.1} parent=11 // pred_check_branch
          %248 = sbr.rel (%p246) target = $region36
        $region35: #{svd_tpa_attention_forward.1} parent=11 // pred_region
          _
        $region36: #{svd_tpa_attention_forward.1} parent=11 // pred_fallthru
          _
        // Predicated region
        $region37: #{svd_tpa_attention_forward.1} parent=11 // pred_check
          %p249 = pneg %p190
        $region38: #{svd_tpa_attention_forward.1} parent=11 // pred_check_branch
          %251 = sbr.rel (%p249) target = $region40
        $region39: #{svd_tpa_attention_forward.1} parent=11 // pred_region
          _
        $region40: #{svd_tpa_attention_forward.1} parent=11 // pred_fallthru
          _
      $region12: #{svd_tpa_attention_forward.1} parent=5 // pred_fallthru
        _
      %p252 = scmp.lt.s32.totalorder %s17, 2
      // Predicated region
      $region41: #{svd_tpa_attention_forward.1} parent=5 // pred_check
        %p253 = pneg %p252
      $region42: #{svd_tpa_attention_forward.1} parent=5 // pred_check_branch
        %255 = sbr.rel (%p253) target = $region44
      $region43: #{svd_tpa_attention_forward.1} parent=5 // pred_region
        // Predicated region
        $region45: #{svd_tpa_attention_forward.1} parent=43 // pred_check
          %p256 = pneg %p37
        $region46: #{svd_tpa_attention_forward.1} parent=43 // pred_check_branch
          %258 = sbr.rel (%p256) target = $region48
        $region47: #{svd_tpa_attention_forward.1} parent=43 // pred_region
          %p259 = scmp.lt.s32.totalorder %s17, 1
          %s260 = scalar_select %p259, %s17, 1
          %s261 = smul.addr %s260, 8
          %s262 = scalar_lea.vmem %s0, %s261
        $region48: #{svd_tpa_attention_forward.1} parent=43 // pred_fallthru
          _
      $region44: #{svd_tpa_attention_forward.1} parent=5 // pred_fallthru
        _
      %p263 = scmp.le.s32.totalorder 1, %s17
      %p264 = scmp.lt.s32.totalorder %s17, 3
      %p265 = pnand %p263, %p264
      %p266 = pneg %p265
      // Predicated region
      $region49: #{svd_tpa_attention_forward.1} parent=5 // pred_check
        _
      $region50: #{svd_tpa_attention_forward.1} parent=5 // pred_check_branch
        %268 = sbr.rel (%p265) target = $region52
      $region51: #{svd_tpa_attention_forward.1} parent=5 // pred_region
        %s269 = ssub.s32 %s17, 1
        %p270 = scmp.lt.s32.totalorder %s22, 1
        %s271 = scalar_select %p270, %s22, 1
        %s272 = smul.addr %s271, 8
        %s273 = scalar_lea.vmem %s0, %s272
        %p274 = pneg %p43
        %p275 = pneg %p40
        %p276 = pneg %p64
        %p277 = pneg %p61
        %p278 = pneg %p85
        %p279 = pneg %p82
        %p280 = pneg %p106
        %p281 = pneg %p103
        %p282 = pneg %p127
        %p283 = pneg %p124
        %p284 = pneg %p148
        %p285 = pneg %p145
        %p286 = pneg %p169
        %p287 = pneg %p166
        %p288 = pneg %p190
        %p289 = pneg %p187
        %p290 = pneg %p216
        %p291 = pneg %p213
        %s292 = sand.u32 %s203, 1
        %s293 = scalar_lea.sflag [#allocation4], %s292
        %s294 = sand.u32 %s203, 1
        %s295 = smul.addr %s294, 8
        %s296 = scalar_lea.vmem [#allocation3], %s295
        %p297 = scmp.lt.s32.totalorder %s22, 1
        %s298 = scalar_select %p297, %s22, 1
        %s299 = smul.addr %s298, 8
        %s300 = scalar_lea.vmem %s0, %s299
        %v301 = vld [vmem:[%s300] sm:$0xff]
        %v302 = vld [vmem:[%s1] sm:$0xff]
        %v303 = vld [vmem:[%s1 + $0x8] sm:$0xff]
        %v304 = vld [vmem:[%s1 + $0x10] sm:$0xff]
        %v305 = vld [vmem:[%s1 + $0x18] sm:$0xff]
        %vm306 = vcmask 261120
        %v308 = vsel %vm306, %v301, 0
        %310 = vmatpush.msra.mxu0 0.0
        %311 = vmatpush.msra.mxu0 0.0
        %312 = vmatpush.msra.mxu0 0.0
        %313 = vmatpush.msra.mxu0 0.0
        %314 = vmatpush.msra.mxu0 0.0
        %315 = vmatpush.msra.mxu0 0.0
        %316 = vmatpush.msra.mxu0 0.0
        %317 = vmatpush.msra.mxu0 0.0
        %318 = vmatpush.msra.mxu0 0.0
        %319 = vmatpush.msra.mxu0 0.0
        %320 = vmatpush.msra.mxu0 0.0
        %321 = vmatpush.msra.mxu0 0.0
        %322 = vmatpush.msra.mxu0 %v305
        %323 = vmatpush.msra.mxu0 %v304
        %324 = vmatpush.msra.mxu0 %v303
        %325 = vmatpush.msra.mxu0 %v302
        %326 = vmatmul.f32.gmra.mxu0 %v308
        %v327 = vpop.f32.mrf.mxu0
        %v328 = vadd.f32 0.0, %v327
        %329 = vdwg.mxu0
        %v330 = vld [vmem:[%s2] sm:$0xff]
        %v331 = vld [vmem:[%s3] sm:$0xf]
        %v332 = vld [vmem:[%s4] sm:$0xf]
        %v333 = vld [vmem:[%s5] sm:$0x1]
        %v334 = vld [vmem:[%s6] sm:$0x1]
        %336 = vset.pattern.permute.xlu0 0
        %337 = vperm.xlu0 %336, %v328
        %v338 = vpop.permute.xlu0 %337
        %v340 = vperm.slane %v330, 0
        %v341 = vmul.f32 %v338, %v340
        %342 = vset.pattern.permute.xlu0 1
        %343 = vperm.xlu0 %342, %v328
        %v344 = vpop.permute.xlu0 %343
        %v346 = vperm.slane %v330, 1
        %v347 = vmul.f32 %v344, %v346
        %v348 = vadd.f32 %v341, %v347
        %349 = vset.pattern.permute.xlu0 2
        %350 = vperm.xlu0 %349, %v328
        %v351 = vpop.permute.xlu0 %350
        %v353 = vperm.slane %v330, 2
        %v354 = vmul.f32 %v351, %v353
        %355 = vset.pattern.permute.xlu0 3
        %356 = vperm.xlu0 %355, %v328
        %v357 = vpop.permute.xlu0 %356
        %v359 = vperm.slane %v330, 3
        %v360 = vmul.f32 %v357, %v359
        %v361 = vadd.f32 %v354, %v360
        %362 = vset.pattern.permute.xlu0 4
        %363 = vperm.xlu0 %362, %v328
        %v364 = vpop.permute.xlu0 %363
        %v366 = vperm.slane %v330, 4
        %v367 = vmul.f32 %v364, %v366
        %368 = vset.pattern.permute.xlu0 5
        %369 = vperm.xlu0 %368, %v328
        %v370 = vpop.permute.xlu0 %369
        %v372 = vperm.slane %v330, 5
        %v373 = vmul.f32 %v370, %v372
        %v374 = vadd.f32 %v367, %v373
        %375 = vset.pattern.permute.xlu0 6
        %376 = vperm.xlu0 %375, %v328
        %v377 = vpop.permute.xlu0 %376
        %v379 = vperm.slane %v330, 6
        %v380 = vmul.f32 %v377, %v379
        %381 = vset.pattern.permute.xlu0 7
        %382 = vperm.xlu0 %381, %v328
        %v383 = vpop.permute.xlu0 %382
        %v385 = vperm.slane %v330, 7
        %v386 = vmul.f32 %v383, %v385
        %v387 = vadd.f32 %v380, %v386
        %v388 = vmul.f32 %v348, %v348
        %v389 = vmul.f32 %v361, %v361
        %v390 = vmul.f32 %v374, %v374
        %v391 = vmul.f32 %v387, %v387
        %vm392 = vcmask 130048
        %v393 = vsel %vm392, %v388, 0.0
        %394 = vadd.xlane.f32.xlu0 %v393
        %v395 = vpop.xlane.xlu0 %394
        %v396 = vsel %vm392, %v389, 0.0
        %397 = vadd.xlane.f32.xlu0 %v396
        %v398 = vpop.xlane.xlu0 %397
        %v399 = vsel %vm392, %v390, 0.0
        %400 = vadd.xlane.f32.xlu0 %v399
        %v401 = vpop.xlane.xlu0 %400
        %v402 = vsel %vm392, %v391, 0.0
        %403 = vadd.xlane.f32.xlu0 %v402
        %v404 = vpop.xlane.xlu0 %403
        %v405 = vrcp.pop 16.0
        %v406 = vmul.f32 16.0, %v405
        %v407 = vsub.f32 1.0, %v406
        %v408 = vmul.f32 %v405, %v407
        %v409 = vadd.f32 %v405, %v408
        %vm410 = vweird.f32 %v405
        %v411 = vsel %vm410, %v405, %v409
        %v412 = vmul.f32 %v395, %v411
        %v413 = vmul.f32 %v398, %v411
        %v414 = vmul.f32 %v401, %v411
        %v415 = vmul.f32 %v404, %v411
        %v416 = vadd.f32 %v412, 1e-06
        %v417 = vadd.f32 %v413, 1e-06
        %v418 = vadd.f32 %v414, 1e-06
        %v419 = vadd.f32 %v415, 1e-06
        %v420 = vrsqrt.pop %v416
        %v421 = vmul.f32 %v420, %v416
        %v422 = vmul.f32 %v421, %v420
        %v423 = vmul.f32 0.5, %v422
        %v424 = vsub.f32 1.5, %v423
        %v425 = vmul.f32 %v420, %v424
        %vm426 = vweird.f32 %v416
        %vm427 = vweird.f32 %v420
        %vm428 = vmor %vm426, %vm427
        %v429 = vsel %vm428, %v420, %v425
        %v430 = vrsqrt.pop %v417
        %v431 = vmul.f32 %v430, %v417
        %v432 = vmul.f32 %v431, %v430
        %v433 = vmul.f32 0.5, %v432
        %v434 = vsub.f32 1.5, %v433
        %v435 = vmul.f32 %v430, %v434
        %vm436 = vweird.f32 %v417
        %vm437 = vweird.f32 %v430
        %vm438 = vmor %vm436, %vm437
        %v439 = vsel %vm438, %v430, %v435
        %v440 = vrsqrt.pop %v418
        %v441 = vmul.f32 %v440, %v418
        %v442 = vmul.f32 %v441, %v440
        %v443 = vmul.f32 0.5, %v442
        %v444 = vsub.f32 1.5, %v443
        %v445 = vmul.f32 %v440, %v444
        %vm446 = vweird.f32 %v418
        %vm447 = vweird.f32 %v440
        %vm448 = vmor %vm446, %vm447
        %v449 = vsel %vm448, %v440, %v445
        %v450 = vrsqrt.pop %v419
        %v451 = vmul.f32 %v450, %v419
        %v452 = vmul.f32 %v451, %v450
        %v453 = vmul.f32 0.5, %v452
        %v454 = vsub.f32 1.5, %v453
        %v455 = vmul.f32 %v450, %v454
        %vm456 = vweird.f32 %v419
        %vm457 = vweird.f32 %v450
        %vm458 = vmor %vm456, %vm457
        %v459 = vsel %vm458, %v450, %v455
        %v460 = vmul.f32 %v348, %v429
        %v461 = vmul.f32 %v361, %v439
        %v462 = vmul.f32 %v374, %v449
        %v463 = vmul.f32 %v387, %v459
        %v465 = vperm.slane %v333, 0
        %v467 = vmul.f32 %v460, %v465
        %v468 = vmul.f32 %v461, %v465
        %v469 = vmul.f32 %v462, %v465
        %v470 = vmul.f32 %v463, %v465
        %v471 = vlaneseq
        %v472 = vshrl.u32 %v471, 7
        %v473 = vlaneseq
        %v474 = vand.u32 %v473, 127
        %vm475 = vcmp.le.s32.totalorder %v474, %v472
        %v476 = vsel %vm475, 0.0, -2.3819763e+38
        %477 = vset.pattern.permute.xlu0 8
        %478 = vperm.xlu0 %477, %v328
        %v479 = vpop.permute.xlu0 %478
        %v481 = vperm.slane %v331, 0
        %v482 = vmul.f32 %v479, %v481
        %483 = vset.pattern.permute.xlu0 9
        %484 = vperm.xlu0 %483, %v328
        %v485 = vpop.permute.xlu0 %484
        %v487 = vperm.slane %v331, 1
        %v488 = vmul.f32 %v485, %v487
        %v489 = vadd.f32 %v482, %v488
        %490 = vset.pattern.permute.xlu0 12
        %491 = vperm.xlu0 %490, %v328
        %v492 = vpop.permute.xlu0 %491
        %v494 = vperm.slane %v332, 0
        %v495 = vmul.f32 %v492, %v494
        %496 = vset.pattern.permute.xlu0 13
        %497 = vperm.xlu0 %496, %v328
        %v498 = vpop.permute.xlu0 %497
        %v500 = vperm.slane %v332, 1
        %v501 = vmul.f32 %v498, %v500
        %v502 = vadd.f32 %v495, %v501
        %v503 = vmul.f32 %v489, %v489
        %v504 = vsel %vm392, %v503, 0.0
        %505 = vadd.xlane.f32.xlu0 %v504
        %v506 = vpop.xlane.xlu0 %505
        %v507 = vmul.f32 %v506, %v411
        %v508 = vadd.f32 %v507, 1e-06
        %v509 = vrsqrt.pop %v508
        %v510 = vmul.f32 %v509, %v508
        %v511 = vmul.f32 %v510, %v509
        %v512 = vmul.f32 0.5, %v511
        %v513 = vsub.f32 1.5, %v512
        %v514 = vmul.f32 %v509, %v513
        %vm515 = vweird.f32 %v508
        %vm516 = vweird.f32 %v509
        %vm517 = vmor %vm515, %vm516
        %v518 = vsel %vm517, %v509, %v514
        %v519 = vmul.f32 %v489, %v518
        %v521 = vperm.slane %v334, 0
        %v523 = vmul.f32 %v519, %v521
        %v525 = vsel %vm392, %v467, 0
        %v528 = vsel %vm392, %v468, 0
        %v531 = vsel %vm392, %v523, 0
        %533 = vmatpush.xpose.msra.mxu0 0.0
        %534 = vmatpush.xpose.msra.mxu0 0.0
        %535 = vmatpush.xpose.msra.mxu0 0.0
        %536 = vmatpush.xpose.msra.mxu0 0.0
        %537 = vmatpush.xpose.msra.mxu0 0.0
        %538 = vmatpush.xpose.msra.mxu0 0.0
        %539 = vmatpush.xpose.msra.mxu0 0.0
        %540 = vmatpush.xpose.msra.mxu0 0.0
        %541 = vmatpush.xpose.msra.mxu0 0.0
        %542 = vmatpush.xpose.msra.mxu0 0.0
        %543 = vmatpush.xpose.msra.mxu0 0.0
        %544 = vmatpush.xpose.msra.mxu0 0.0
        %545 = vmatpush.xpose.msra.mxu0 0.0
        %546 = vmatpush.xpose.msra.mxu0 0.0
        %547 = vmatpush.xpose.msra.mxu0 0.0
        %548 = vmatpush.xpose.msra.mxu0 %v531
        %549 = vmatmul.f32.gmra.mxu0 %v525
        %v550 = vpop.f32.mrf.mxu0
        %v551 = vadd.f32 %v476, %v550
        %552 = vmatmul.f32.gmra.mxu0 %v528
        %v553 = vpop.f32.mrf.mxu0
        %v554 = vadd.f32 %v476, %v553
        %555 = vdwg.mxu0
        %vm556 = vcmask 64512
        %v557 = vsel %vm556, %v551, -inf
        %558 = vmax.xlane.f32.xlu0 %v557
        %v559 = vpop.xlane.xlu0 %558
        %v560 = vsel %vm556, %v554, -inf
        %561 = vmax.xlane.f32.xlu0 %v560
        %v562 = vpop.xlane.xlu0 %561
        %v563 = vsub.f32 %v551, %v559
        %v564 = vsub.f32 %v554, %v562
        %v565 = vmul.f32 %v563, 1.442695
        %v566 = vpow.pop %v565
        %v567 = vmul.f32 %v564, 1.442695
        %v568 = vpow.pop %v567
        %v569 = vsel %vm556, %v566, 0.0
        %570 = vadd.xlane.f32.xlu0 %v569
        %v571 = vpop.xlane.xlu0 %570
        %v572 = vsel %vm556, %v568, 0.0
        %573 = vadd.xlane.f32.xlu0 %v572
        %v574 = vpop.xlane.xlu0 %573
        %v575 = vrcp.pop %v571
        %v576 = vrcp.pop %v574
        %v577 = vmul.f32 %v571, %v575
        %v578 = vmul.f32 %v574, %v576
        %v579 = vsub.f32 2.0, %v577
        %v580 = vsub.f32 2.0, %v578
        %v581 = vmul.f32 %v575, %v579
        %v582 = vmul.f32 %v576, %v580
        %v583 = vmul.f32 %v571, %v581
        %v584 = vmul.f32 %v574, %v582
        %v585 = vsub.f32 2.0, %v583
        %v586 = vsub.f32 2.0, %v584
        %v587 = vmul.f32 %v581, %v585
        %v588 = vmul.f32 %v582, %v586
        %v589 = vmul.f32 %v566, %v587
        %v590 = vmul.f32 %v568, %v588
        %v592 = vsel %vm556, %v589, 0
        %v595 = vsel %vm556, %v590, 0
        %597 = vmatpush.msra.mxu0 0.0
        %598 = vmatpush.msra.mxu0 0.0
        %599 = vmatpush.msra.mxu0 0.0
        %600 = vmatpush.msra.mxu0 0.0
        %601 = vmatpush.msra.mxu0 0.0
        %602 = vmatpush.msra.mxu0 0.0
        %603 = vmatpush.msra.mxu0 0.0
        %604 = vmatpush.msra.mxu0 0.0
        %605 = vmatpush.msra.mxu0 0.0
        %606 = vmatpush.msra.mxu0 0.0
        %607 = vmatpush.msra.mxu0 0.0
        %608 = vmatpush.msra.mxu0 0.0
        %609 = vmatpush.msra.mxu0 0.0
        %610 = vmatpush.msra.mxu0 0.0
        %611 = vmatpush.msra.mxu0 0.0
        %612 = vmatpush.msra.mxu0 %v502
        %613 = vmatmul.f32.gmra.mxu0 %v592
        %v614 = vpop.f32.mrf.mxu0
        %v615 = vadd.f32 0.0, %v614
        %616 = vmatmul.f32.gmra.mxu0 %v595
        %v617 = vpop.f32.mrf.mxu0
        %v618 = vadd.f32 0.0, %v617
        %619 = vdwg.mxu0
        %620 = vst.msk [vmem:[#allocation2] sm:$0xff] %vm392, %v615
        %622 = vrot.lane.b32.xlu0 %v618, 16
        %v623 = vpop.permute.xlu0 %622
        %vm625 = vcmask 261248
        %626 = vst.msk [vmem:[#allocation2] sm:$0xff] %vm625, %v623
        %627 = vset.pattern.permute.xlu0 10
        %628 = vperm.xlu0 %627, %v328
        %v629 = vpop.permute.xlu0 %628
        %v631 = vperm.slane %v331, 2
        %v632 = vmul.f32 %v629, %v631
        %633 = vset.pattern.permute.xlu0 11
        %634 = vperm.xlu0 %633, %v328
        %v635 = vpop.permute.xlu0 %634
        %v637 = vperm.slane %v331, 3
        %v638 = vmul.f32 %v635, %v637
        %v639 = vadd.f32 %v632, %v638
        %640 = vset.pattern.permute.xlu0 14
        %641 = vperm.xlu0 %640, %v328
        %v642 = vpop.permute.xlu0 %641
        %v644 = vperm.slane %v332, 2
        %v645 = vmul.f32 %v642, %v644
        %646 = vset.pattern.permute.xlu0 15
        %647 = vperm.xlu0 %646, %v328
        %v648 = vpop.permute.xlu0 %647
        %v650 = vperm.slane %v332, 3
        %v651 = vmul.f32 %v648, %v650
        %v652 = vadd.f32 %v645, %v651
        %v653 = vmul.f32 %v639, %v639
        %v654 = vsel %vm392, %v653, 0.0
        %655 = vadd.xlane.f32.xlu0 %v654
        %v656 = vpop.xlane.xlu0 %655
        %v657 = vmul.f32 %v656, %v411
        %v658 = vadd.f32 %v657, 1e-06
        %v659 = vrsqrt.pop %v658
        %v660 = vmul.f32 %v659, %v658
        %v661 = vmul.f32 %v660, %v659
        %v662 = vmul.f32 0.5, %v661
        %v663 = vsub.f32 1.5, %v662
        %v664 = vmul.f32 %v659, %v663
        %vm665 = vweird.f32 %v658
        %vm666 = vweird.f32 %v659
        %vm667 = vmor %vm665, %vm666
        %v668 = vsel %vm667, %v659, %v664
        %v669 = vmul.f32 %v639, %v668
        %v670 = vmul.f32 %v669, %v521
        %v672 = vsel %vm392, %v469, 0
        %v675 = vsel %vm392, %v470, 0
        %v678 = vsel %vm392, %v670, 0
        %680 = vmatpush.xpose.msra.mxu0 0.0
        %681 = vmatpush.xpose.msra.mxu0 0.0
        %682 = vmatpush.xpose.msra.mxu0 0.0
        %683 = vmatpush.xpose.msra.mxu0 0.0
        %684 = vmatpush.xpose.msra.mxu0 0.0
        %685 = vmatpush.xpose.msra.mxu0 0.0
        %686 = vmatpush.xpose.msra.mxu0 0.0
        %687 = vmatpush.xpose.msra.mxu0 0.0
        %688 = vmatpush.xpose.msra.mxu0 0.0
        %689 = vmatpush.xpose.msra.mxu0 0.0
        %690 = vmatpush.xpose.msra.mxu0 0.0
        %691 = vmatpush.xpose.msra.mxu0 0.0
        %692 = vmatpush.xpose.msra.mxu0 0.0
        %693 = vmatpush.xpose.msra.mxu0 0.0
        %694 = vmatpush.xpose.msra.mxu0 0.0
        %695 = vmatpush.xpose.msra.mxu0 %v678
        %696 = vmatmul.f32.gmra.mxu0 %v672
        %v697 = vpop.f32.mrf.mxu0
        %v698 = vadd.f32 %v476, %v697
        %699 = vmatmul.f32.gmra.mxu0 %v675
        %v700 = vpop.f32.mrf.mxu0
        %v701 = vadd.f32 %v476, %v700
        %702 = vdwg.mxu0
        %v703 = vsel %vm556, %v698, -inf
        %704 = vmax.xlane.f32.xlu0 %v703
        %v705 = vpop.xlane.xlu0 %704
        %v706 = vsel %vm556, %v701, -inf
        %707 = vmax.xlane.f32.xlu0 %v706
        %v708 = vpop.xlane.xlu0 %707
        %v709 = vsub.f32 %v698, %v705
        %v710 = vsub.f32 %v701, %v708
        %v711 = vmul.f32 %v709, 1.442695
        %v712 = vpow.pop %v711
        %v713 = vmul.f32 %v710, 1.442695
        %v714 = vpow.pop %v713
        %v715 = vsel %vm556, %v712, 0.0
        %716 = vadd.xlane.f32.xlu0 %v715
        %v717 = vpop.xlane.xlu0 %716
        %v718 = vsel %vm556, %v714, 0.0
        %719 = vadd.xlane.f32.xlu0 %v718
        %v720 = vpop.xlane.xlu0 %719
        %v721 = vrcp.pop %v717
        %v722 = vrcp.pop %v720
        %v723 = vmul.f32 %v717, %v721
        %v724 = vmul.f32 %v720, %v722
        %v725 = vsub.f32 2.0, %v723
        %v726 = vsub.f32 2.0, %v724
        %v727 = vmul.f32 %v721, %v725
        %v728 = vmul.f32 %v722, %v726
        %v729 = vmul.f32 %v717, %v727
        %v730 = vmul.f32 %v720, %v728
        %v731 = vsub.f32 2.0, %v729
        %v732 = vsub.f32 2.0, %v730
        %v733 = vmul.f32 %v727, %v731
        %v734 = vmul.f32 %v728, %v732
        %v735 = vmul.f32 %v712, %v733
        %v736 = vmul.f32 %v714, %v734
        %v738 = vsel %vm556, %v735, 0
        %v741 = vsel %vm556, %v736, 0
        %743 = vmatpush.msra.mxu0 0.0
        %744 = vmatpush.msra.mxu0 0.0
        %745 = vmatpush.msra.mxu0 0.0
        %746 = vmatpush.msra.mxu0 0.0
        %747 = vmatpush.msra.mxu0 0.0
        %748 = vmatpush.msra.mxu0 0.0
        %749 = vmatpush.msra.mxu0 0.0
        %750 = vmatpush.msra.mxu0 0.0
        %751 = vmatpush.msra.mxu0 0.0
        %752 = vmatpush.msra.mxu0 0.0
        %753 = vmatpush.msra.mxu0 0.0
        %754 = vmatpush.msra.mxu0 0.0
        %755 = vmatpush.msra.mxu0 0.0
        %756 = vmatpush.msra.mxu0 0.0
        %757 = vmatpush.msra.mxu0 0.0
        %758 = vmatpush.msra.mxu0 %v652
        %759 = vmatmul.f32.gmra.mxu0 %v738
        %v760 = vpop.f32.mrf.mxu0
        %v761 = vadd.f32 0.0, %v760
        %762 = vmatmul.f32.gmra.mxu0 %v741
        %v763 = vpop.f32.mrf.mxu0
        %v764 = vadd.f32 0.0, %v763
        %765 = vdwg.mxu0
        %767 = vrot.lane.b32.xlu0 %v761, 32
        %v768 = vpop.permute.xlu0 %767
        %vm770 = vcmask 392448
        %771 = vst.msk [vmem:[#allocation2] sm:$0xff] %vm770, %v768
        %773 = vrot.lane.b32.xlu0 %v764, 48
        %v774 = vpop.permute.xlu0 %773
        %vm776 = vcmask 523648
        %777 = vst.msk [vmem:[#allocation2] sm:$0xff] %vm776, %v774
        %v778 = vld [vmem:[#allocation2] sm:$0xff]
        %v779 = vld [vmem:[%s7] sm:$0xff]
        %v780 = vld [vmem:[%s7 + $0x8] sm:$0xff]
        %v781 = vld [vmem:[%s7 + $0x10] sm:$0xff]
        %v782 = vld [vmem:[%s7 + $0x18] sm:$0xff]
        %v783 = vld [vmem:[%s7 + $0x20] sm:$0xff]
        %v784 = vld [vmem:[%s7 + $0x28] sm:$0xff]
        %v785 = vld [vmem:[%s7 + $0x30] sm:$0xff]
        %v786 = vld [vmem:[%s7 + $0x38] sm:$0xff]
        %vm787 = vcmask 523264
        %v789 = vsel %vm787, %v778, 0
        %791 = vmatpush.msra.mxu0 0.0
        %792 = vmatpush.msra.mxu0 0.0
        %793 = vmatpush.msra.mxu0 0.0
        %794 = vmatpush.msra.mxu0 0.0
        %795 = vmatpush.msra.mxu0 0.0
        %796 = vmatpush.msra.mxu0 0.0
        %797 = vmatpush.msra.mxu0 0.0
        %798 = vmatpush.msra.mxu0 0.0
        %799 = vmatpush.msra.mxu0 %v786
        %800 = vmatpush.msra.mxu0 %v785
        %801 = vmatpush.msra.mxu0 %v784
        %802 = vmatpush.msra.mxu0 %v783
        %803 = vmatpush.msra.mxu0 %v782
        %804 = vmatpush.msra.mxu0 %v781
        %805 = vmatpush.msra.mxu0 %v780
        %806 = vmatpush.msra.mxu0 %v779
        %807 = vmatmul.f32.gmra.mxu0 %v789
        %v808 = vpop.f32.mrf.mxu0
        %v809 = vadd.f32 0.0, %v808
        %810 = vdwg.mxu0
        %811 = vst.msk [vmem:[%s296] sm:$0xff] %vm306, %v809
        %s812 = sand.u32 %s203, 1
        %s813 = scalar_lea.sflag [#allocation4], %s812
        %s814 = sand.u32 %s203, 1
        %s815 = smul.addr %s814, 8
        %s816 = scalar_lea.vmem [#allocation3], %s815
        // Predicated region
        $region53: #{svd_tpa_attention_forward.1} parent=51 // pred_check
          %p817 = pneg %p213
        $region54: #{svd_tpa_attention_forward.1} parent=51 // pred_check_branch
          %819 = sbr.rel (%p817) target = $region56
        $region55: #{svd_tpa_attention_forward.1} parent=51 // pred_region
          %821 = vsyncadd %s813, 0
          %s822 = smul.addr %s22, 8
          %s823 = scalar_lea.hbm %s8, %s822
          %s825 = sshll.u32 %s816, 4
          %s826 = int_to_ptr.vmem [resolvable:$true] %s825
          %s827 = sshll.u32 %s823, 4
          %s828 = int_to_ptr.hbm [resolvable:$true] %s827
          %830 = dma.vmem_to_hbm [thread:$0]  %s826, 128, %s828, %s813
        $region56: #{svd_tpa_attention_forward.1} parent=51 // pred_fallthru
          _
      $region52: #{svd_tpa_attention_forward.1} parent=5 // pred_fallthru
        _
      %p831 = scmp.le.s32.totalorder 2, %s17
      // Predicated region
      $region57: #{svd_tpa_attention_forward.1} parent=5 // pred_check
        %p832 = pneg %p831
      $region58: #{svd_tpa_attention_forward.1} parent=5 // pred_check_branch
        %834 = sbr.rel (%p832) target = $region60
      $region59: #{svd_tpa_attention_forward.1} parent=5 // pred_region
        %s835 = ssub.s32 %s17, 2
        // Predicated region
        $region61: #{svd_tpa_attention_forward.1} parent=59 // pred_check
          %p836 = pneg %p219
        $region62: #{svd_tpa_attention_forward.1} parent=59 // pred_check_branch
          %838 = sbr.rel (%p836) target = $region64
        $region63: #{svd_tpa_attention_forward.1} parent=59 // pred_region
          %s839 = sand.u32 %s204, 1
          %s840 = scalar_lea.sflag [#allocation4], %s839
          %s841 = sand.u32 %s204, 1
          %s842 = smul.addr %s841, 8
          %s843 = scalar_lea.vmem [#allocation3], %s842
          %845 = dma.done %s840, 128
        $region64: #{svd_tpa_attention_forward.1} parent=59 // pred_fallthru
          _
      $region60: #{svd_tpa_attention_forward.1} parent=5 // pred_fallthru
        _
    $region6: #{svd_tpa_attention_forward.1} parent=1 // loop_footer
      %s21 = sadd.s32 1, %s17
    $region7: #{svd_tpa_attention_forward.1} parent=1 // loop_footer_branch
      %16 = sbr.rel target = $region3
    $region8: #{svd_tpa_attention_forward.1} parent=1 // loop_exit
      _
    %846 = vsyncpa [#allocation4], 1
    %s847 = scalar_lea.sflag [#allocation4], 1
    %848 = vsyncpa %s847, 1

</llo_original>
